<compile_context>
chip_gen: v6e
topology: v6e:2x2x1
jax: 0.10.0
libtpu: 0.0.40
codegen_flags: <defaults>
</compile_context>

<pallas_src>
import functools

import jax
import jax.numpy as jnp
from jax.experimental import pallas as pl
from jax.experimental.pallas import tpu as pltpu

HIDDEN = 16         # conv1 out_channels (fixed by the module)
NUM_BASES = 30      # num_bases (fixed by the module)
NUM_CLASSES = 4     # dataset.num_classes (synthetic choice)

LANE = 128          # dst (lane) padding
SUBLANE_I8 = 32     # src (sublane) padding for the int8 incidence


def _round_up(n, m):
    return ((n + m - 1) // m) * m


def _tpu_config():
    """Returns (vmem_limit_bytes, assume_two_tensorcores), generation-aware and defensive."""
    try:
        vmem_phys = int(pltpu.get_tpu_info().vmem_capacity_bytes)
    except Exception:
        vmem_phys = 0
    if vmem_phys >= (100 << 20):      # v5e / v6e: 128 MiB physical VMEM, single TensorCore
        return 96 << 20, False
    # v7x (64 MiB physical, 2 TCs) or unknown chip: stay conservative, keep >=2 dst tiles.
    return 40 << 20, True


def _pick_dst_tile(n_dst, col_bytes, fixed_bytes, vmem_limit, two_tc):
    """Largest dst tile (multiple of 128 dividing n_dst) whose double-buffered working set
    fits in ~60% of the scoped VMEM limit; on 2-TC chips cap at n_dst/2 so the parallel dst
    grid axis has at least two blocks."""
    budget = int(vmem_limit * 0.6)
    cap = n_dst
    if two_tc and n_dst >= 2 * LANE:
        cap = n_dst // 2
    best, t = LANE, LANE
    while t <= cap:
        if n_dst % t == 0 and fixed_bytes + t * col_bytes <= budget:
            best = t
        t += LANE
    return best


# ----------------------------- Pallas kernel --------------------------------

def _rgcn_layer_kernel(w_ref, a_ref, inv_ref, self_ref, o_ref, *, activation):
    """o[:, dst_tile] = act( (sum_r W_r @ A_r[:, dst_tile]) * inv_deg + self_term ).

    grid = (dst_tiles, R); the output block index is constant over r, so o_ref stays resident
    in VMEM and is the f32 accumulator. Normalization (1/deg), the self term and the activation
    run once in the epilogue in f32 (nothing precision-sensitive is baked into the int8 stream).
    """
    r = pl.program_id(1)

    @pl.when(r == 0)
    def _():
        o_ref[...] = jnp.zeros_like(o_ref)

    # int8 incidence tile -> bf16 on the VPU, matmul on the MXU, accumulate in f32.
    o_ref[...] += jnp.dot(w_ref[...], a_ref[...].astype(jnp.bfloat16),
                          preferred_element_type=jnp.float32)

    @pl.when(r == pl.num_programs(1) - 1)
    def _():
        z = o_ref[...] * inv_ref[...] + self_ref[...]
        if activation == "relu":
            o_ref[...] = jnp.maximum(z, 0.0)
        else:  # log_softmax over the class (sublane) axis — cheap 4-row reduce
            zmax = jnp.max(z, axis=0, keepdims=True)
            lse = jnp.log(jnp.sum(jnp.exp(z - zmax), axis=0, keepdims=True)) + zmax
            o_ref[...] = z - lse


def _rgcn_layer(w_rt, a_rt, inv_deg, self_t, activation, vmem_limit, two_tc):
    """w_rt: (R, Cout, Nsrc) bf16, a_rt: (R, Nsrc, Ndst) int8,
       inv_deg: (1, Ndst) f32, self_t: (Cout, Ndst) f32  ->  (Cout, Ndst) f32."""
    R, C, n_src = w_rt.shape
    n_dst = a_rt.shape[2]

    # VMEM accounting for the tile pick: double-buffered A/inv/self columns + resident f32 out,
    # plus the (td-independent) double-buffered bf16 W_r block.
    col_bytes = 2 * (n_src * 1 + (C + 1) * 4) + C * 4
    fixed_bytes = 2 * C * n_src * 2
    td = _pick_dst_tile(n_dst, col_bytes, fixed_bytes, vmem_limit, two_tc)

    kernel = functools.partial(_rgcn_layer_kernel, activation=activation)
    return pl.pallas_call(
        kernel,
        out_shape=jax.ShapeDtypeStruct((C, n_dst), jnp.float32),
        grid=(n_dst // td, R),
        in_specs=[
            pl.BlockSpec((None, C, n_src), lambda d, r: (r, 0, 0)),    # W_r, bf16 (relation squeezed)
            pl.BlockSpec((None, n_src, td), lambda d, r: (r, 0, d)),   # A_r (src, dst) tile, int8
            pl.BlockSpec((1, td), lambda d, r: (0, d)),                # 1/deg, f32
            pl.BlockSpec((C, td), lambda d, r: (0, d)),                # self term (+bias), f32
        ],
        out_specs=pl.BlockSpec((C, td), lambda d, r: (0, d)),
        compiler_params=pltpu.CompilerParams(
            dimension_semantics=("parallel", "arbitrary"),
            vmem_limit_bytes=vmem_limit),
    )(w_rt, a_rt, inv_deg, self_t)


# --------------------------------- glue -------------------------------------
# TODO(synk): the edge-list scatter_mean has no direct Pallas equivalent; it is folded into a
# dense int8 (transposed) incidence matrix built with an XLA scatter-add outside the kernels.
# The dense formulation is O(R*N^2); beyond moderate N a scalar-prefetch CSR/gather kernel is
# the right structure instead.

def build_incidence_t(edge_index, edge_type, n_src, n_dst, num_relations):
    """int8 edge counts AT[r, src, dst] plus f32 per-dst 1/in-degree row (1, n_dst)."""
    src, dst = edge_index[0], edge_index[1]               # messages flow src -> dst
    a = jnp.zeros((num_relations, n_src, n_dst), jnp.int32)
    a = a.at[edge_type, src, dst].add(1)
    deg = a.sum(axis=(0, 1)).astype(jnp.float32)          # total incoming messages per dst node
    inv = (1.0 / jnp.maximum(deg, 1.0))[None, :]
    # counts fit easily in int8 for any non-pathological multigraph
    return a.astype(jnp.int8), inv


def build_adjacency_ref(edge_index, edge_type, num_nodes, num_relations):
    """f32 reference adjacency A[r, dst, src] (scatter_mean semantics), unpadded."""
    src, dst = edge_index[0], edge_index[1]
    a = jnp.zeros((num_relations, num_nodes, num_nodes), jnp.float32)
    a = a.at[edge_type, dst, src].add(1.0)
    deg = a.sum(axis=(0, 2))
    inv = 1.0 / jnp.maximum(deg, 1.0)
    return a * inv[None, :, None]


def init_params(key, num_nodes, num_relations):
    ks = jax.random.split(key, 6)
    s = 0.1
    return {
        "basis1": s * jax.random.normal(ks[0], (NUM_BASES, num_nodes, HIDDEN), jnp.float32),
        "att1":   s * jax.random.normal(ks[1], (num_relations, NUM_BASES), jnp.float32),
        "root1":  s * jax.random.normal(ks[2], (num_nodes, HIDDEN), jnp.float32),
        "bias1":  jnp.zeros((HIDDEN,), jnp.float32),
        "basis2": s * jax.random.normal(ks[3], (NUM_BASES, HIDDEN, NUM_CLASSES), jnp.float32),
        "att2":   s * jax.random.normal(ks[4], (num_relations, NUM_BASES), jnp.float32),
        "root2":  s * jax.random.normal(ks[5], (HIDDEN, NUM_CLASSES), jnp.float32),
        "bias2":  jnp.zeros((NUM_CLASSES,), jnp.float32),
    }


def net_forward(params, edge_index, edge_type, edge_norm, num_nodes, num_relations):
    del edge_norm  # accepted but unused, exactly like the PyTorch Net.forward
    hp = jax.lax.Precision.HIGHEST
    vmem_limit, two_tc = _tpu_config()

    n_dst = _round_up(num_nodes, LANE)        # lane axis: outputs + adjacency last dim
    n_src = _round_up(num_nodes, SUBLANE_I8)  # sublane axis of the int8 incidence (no 128 pad)

    a_rt, inv_deg = build_incidence_t(edge_index, edge_type, n_src, n_dst, num_relations)

    # ---- layer 1 operands (basis combination = tiny XLA einsum, HIGHEST precision) ----
    basis1 = jnp.pad(params["basis1"], ((0, 0), (0, n_src - num_nodes), (0, 0)))
    w1_rt = jnp.einsum("rb,bnh->rhn", params["att1"], basis1,
                       precision=hp).astype(jnp.bfloat16)                     # (R, H, n_src)
    self1 = (jnp.pad(params["root1"], ((0, n_dst - num_nodes), (0, 0))).T
             + params["bias1"][:, None])                                      # (H, n_dst) f32

    h_t = _rgcn_layer(w1_rt, a_rt, inv_deg, self1, "relu", vmem_limit, two_tc)  # (H, n_dst)

    # ---- layer 2 operands: fold the relation transform into the streamed weights ----
    w2 = jnp.einsum("rb,bhc->rch", params["att2"], params["basis2"], precision=hp)  # (R, C, H)
    h_src = h_t[:, :n_src]                                                          # (H, n_src)
    m_rt = jnp.einsum("rch,hn->rcn", w2, h_src, precision=hp).astype(jnp.bfloat16)  # (R, C, n_src)
    self2 = (jnp.dot(params["root2"].T, h_t, precision=hp)
             + params["bias2"][:, None])                                            # (C, n_dst)

    z_t = _rgcn_layer(m_rt, a_rt, inv_deg, self2, "log_softmax", vmem_limit, two_tc)  # (C, n_dst)
    return z_t[:, :num_nodes].T                                                      # (N, C)


def reference(params, adj):
    hp = jax.lax.Precision.HIGHEST
    w1 = jnp.einsum("rb,bno->rno", params["att1"], params["basis1"], precision=hp)
    h = jnp.einsum("rij,rjo->io", adj, w1, precision=hp) + params["root1"] + params["bias1"]
    h = jnp.maximum(h, 0.0)
    w2 = jnp.einsum("rb,bho->rho", params["att2"], params["basis2"], precision=hp)
    msg = jnp.einsum("rij,jh,rho->io", adj, h, w2, precision=hp)
    z = msg + jnp.dot(h, params["root2"], precision=hp) + params["bias2"]
    return jax.nn.log_softmax(z, axis=1)


if __name__ == "__main__":
    N, R, E = 32, 4, 64   # small synthetic graph: 32 nodes, 4 relations, 64 edges

    key = jax.random.PRNGKey(0)
    k1, k2, k3, kp = jax.random.split(key, 4)
    src = jax.random.randint(k1, (E,), 0, N)
    dst = jax.random.randint(k2, (E,), 0, N)
    edge_index = jnp.stack([src, dst]).astype(jnp.int32)
    edge_type = jax.random.randint(k3, (E,), 0, R).astype(jnp.int32)
    edge_norm = jnp.ones((E,), jnp.float32)   # unused by the forward pass

    params = init_params(kp, N, R)

    out = net_forward(params, edge_index, edge_type, edge_norm, N, R)
    out = jax.block_until_ready(out)

    # sanity check against a pure-JAX f32 HIGHEST-precision reference
    adj = build_adjacency_ref(edge_index, edge_type, N, R)
    ref = reference(params, adj)
    assert out.shape == (N, NUM_CLASSES)
    # exact int8 incidence + f32 epilogue normalization -> tighter tolerance than the bf16-baked
    # adjacency of the previous version (only the weight/message operands are bf16 now).
    max_err = float(jnp.max(jnp.abs(out - ref)))
    assert jnp.allclose(out, ref, atol=2e-3, rtol=2e-3), f"Pallas mismatch, max abs err {max_err}"

    print("KERNEL_OK")
</pallas_src>

<mosaic_0001>
module attributes {stable_mosaic.version = 11 : i64} {
  func.func @_rgcn_layer_kernel(%arg0: i32, %arg1: i32, %arg2: memref<1x16x32xbf16, #tpu.memory_space<vmem>>, %arg3: memref<1x32x128xi8, #tpu.memory_space<vmem>>, %arg4: memref<1x128xf32, #tpu.memory_space<vmem>>, %arg5: memref<16x128xf32, #tpu.memory_space<vmem>>, %arg6: memref<16x128xf32, #tpu.memory_space<vmem>>) attributes {dimension_semantics = [#tpu.dimension_semantics<parallel>, #tpu.dimension_semantics<arbitrary>], iteration_bounds = array<i64: 1, 4>, scalar_prefetch = 0 : i64, scratch_operands = 0 : i64, tpu.core_type = #tpu.core_type<tc>, window_params = [{transform_indices = @transform_0, window_bounds = array<i64: 1, 16, 32>}, {transform_indices = @transform_1, window_bounds = array<i64: 1, 32, 128>}, {transform_indices = @transform_2, window_bounds = array<i64: 1, 128>}, {transform_indices = @transform_3, window_bounds = array<i64: 16, 128>}, {transform_indices = @transform_4, window_bounds = array<i64: 16, 128>}]} {
    %c0_i32 = arith.constant 0 : i32
    %0 = arith.cmpi eq, %arg1, %c0_i32 : i32
    %1 = arith.extui %0 : i1 to i32
    %c0_i32_0 = arith.constant 0 : i32
    %2 = arith.cmpi ne, %1, %c0_i32_0 : i32
    scf.if %2 {
      %cst_11 = arith.constant 0.000000e+00 : f32
      %15 = vector.broadcast %cst_11 : f32 to vector<16x128xf32>
      %c0_12 = arith.constant 0 : index
      %c0_13 = arith.constant 0 : index
      %16 = vector.load %arg6[%c0_12, %c0_13] : memref<16x128xf32, #tpu.memory_space<vmem>>, vector<16x128xf32>
      tpu.vector_store %arg6[%c0_12, %c0_13], %15 {strides = array<i32>} : memref<16x128xf32, #tpu.memory_space<vmem>>, vector<16x128xf32>,
    } else {
    }
    %c0 = arith.constant 0 : index
    %c0_1 = arith.constant 0 : index
    %3 = vector.load %arg6[%c0, %c0_1] : memref<16x128xf32, #tpu.memory_space<vmem>>, vector<16x128xf32>
    %c0_2 = arith.constant 0 : index
    %c0_3 = arith.constant 0 : index
    %c0_4 = arith.constant 0 : index
    %4 = vector.load %arg2[%c0_2, %c0_3, %c0_4] : memref<1x16x32xbf16, #tpu.memory_space<vmem>>, vector<1x16x32xbf16>
    %5 = vector.shape_cast %4 : vector<1x16x32xbf16> to vector<16x32xbf16>
    %c0_5 = arith.constant 0 : index
    %c0_6 = arith.constant 0 : index
    %c0_7 = arith.constant 0 : index
    %6 = vector.load %arg3[%c0_5, %c0_6, %c0_7] : memref<1x32x128xi8, #tpu.memory_space<vmem>>, vector<1x32x128xi8>
    %7 = vector.shape_cast %6 : vector<1x32x128xi8> to vector<32x128xi8>
    %8 = arith.sitofp %7 : vector<32x128xi8> to vector<32x128xbf16>
    %cst = arith.constant dense<0.000000e+00> : vector<16x128xf32>
    %9 = tpu.matmul %5, %8, %cst {dimension_numbers = #tpu.dot_dimension_numbers<[1], [0], [0], [1], [0, 0, 1, 1], [], []>} : vector<16x32xbf16>, vector<32x128xbf16>, vector<16x128xf32> -> vector<16x128xf32>
    %10 = arith.addf %3, %9 : vector<16x128xf32>
    %c0_8 = arith.constant 0 : index
    %c0_9 = arith.constant 0 : index
    %11 = vector.load %arg6[%c0_8, %c0_9] : memref<16x128xf32, #tpu.memory_space<vmem>>, vector<16x128xf32>
    tpu.vector_store %arg6[%c0_8, %c0_9], %10 {strides = array<i32>} : memref<16x128xf32, #tpu.memory_space<vmem>>, vector<16x128xf32>,
    %c3_i32 = arith.constant 3 : i32
    %12 = arith.cmpi eq, %arg1, %c3_i32 : i32
    %13 = arith.extui %12 : i1 to i32
    %c0_i32_10 = arith.constant 0 : i32
    %14 = arith.cmpi ne, %13, %c0_i32_10 : i32
    scf.if %14 {
      %c0_11 = arith.constant 0 : index
      %c0_12 = arith.constant 0 : index
      %15 = vector.load %arg6[%c0_11, %c0_12] : memref<16x128xf32, #tpu.memory_space<vmem>>, vector<16x128xf32>
      %c0_13 = arith.constant 0 : index
      %c0_14 = arith.constant 0 : index
      %16 = vector.load %arg4[%c0_13, %c0_14] : memref<1x128xf32, #tpu.memory_space<vmem>>, vector<1x128xf32>
      %17 = vector.broadcast %16 : vector<1x128xf32> to vector<16x128xf32>
      %18 = arith.mulf %15, %17 : vector<16x128xf32>
      %c0_15 = arith.constant 0 : index
      %c0_16 = arith.constant 0 : index
      %19 = vector.load %arg5[%c0_15, %c0_16] : memref<16x128xf32, #tpu.memory_space<vmem>>, vector<16x128xf32>
      %20 = arith.addf %18, %19 : vector<16x128xf32>
      %cst_17 = arith.constant 0.000000e+00 : f32
      %21 = vector.broadcast %cst_17 : f32 to vector<16x128xf32>
      %22 = arith.maximumf %20, %21 : vector<16x128xf32>
      %c0_18 = arith.constant 0 : index
      %c0_19 = arith.constant 0 : index
      %23 = vector.load %arg6[%c0_18, %c0_19] : memref<16x128xf32, #tpu.memory_space<vmem>>, vector<16x128xf32>
      tpu.vector_store %arg6[%c0_18, %c0_19], %22 {strides = array<i32>} : memref<16x128xf32, #tpu.memory_space<vmem>>, vector<16x128xf32>,
    } else {
    }
    return
  }
  func.func @transform_0(%arg0: i32, %arg1: i32) -> (i32, i32, i32) {
    %c0_i32 = arith.constant 0 : i32
    %c0_i32_0 = arith.constant 0 : i32
    %c0_i32_1 = arith.constant 0 : i32
    return %arg1, %c0_i32, %c0_i32_0 : i32, i32, i32
  }
  func.func @transform_1(%arg0: i32, %arg1: i32) -> (i32, i32, i32) {
    %c0_i32 = arith.constant 0 : i32
    %c0_i32_0 = arith.constant 0 : i32
    return %arg1, %c0_i32, %arg0 : i32, i32, i32
  }
  func.func @transform_2(%arg0: i32, %arg1: i32) -> (i32, i32) {
    %c0_i32 = arith.constant 0 : i32
    %c0_i32_0 = arith.constant 0 : i32
    return %c0_i32, %arg0 : i32, i32
  }
  func.func @transform_3(%arg0: i32, %arg1: i32) -> (i32, i32) {
    %c0_i32 = arith.constant 0 : i32
    %c0_i32_0 = arith.constant 0 : i32
    return %c0_i32, %arg0 : i32, i32
  }
  func.func @transform_4(%arg0: i32, %arg1: i32) -> (i32, i32) {
    %c0_i32 = arith.constant 0 : i32
    %c0_i32_0 = arith.constant 0 : i32
    return %c0_i32, %arg0 : i32, i32
  }
}

</mosaic_0001>

<llo_original>
// kernel: tpu_custom_call.1
$region0: #{tpu_custom_call.1}
  #allocation0 [shape = 'u32[]', space=smem, size = 0x4, offset = 0x4, fixed_abs, tag = 'smem constant byte address 0x4 - core index']
  #allocation1 [shape = 'u32[144,128]{1,0:T(1,128)}', space=vmem, size = 0x12000, scoped, tag = 'internal scratch']
  %s0 = inlined_call_operand.hbm [shape: bf16[4,16,32], index: 0, kind: input, shape index: {}]
  %s1 = inlined_call_operand.hbm [shape: s8[4,32,128], index: 1, kind: input, shape index: {}]
  %s2 = inlined_call_operand.vmem [shape: f32[1,128], index: 2, kind: input, shape index: {}]
  %s3 = inlined_call_operand.hbm [shape: f32[16,128], index: 3, kind: input, shape index: {}]
  %s4 = inlined_call_operand.hbm [shape: f32[16,128], index: 4, kind: output, shape index: {}]
  %s5 = sld [smem:[#allocation0]]
  $region69: #{tpu_custom_call.1} parent=0
    _
  %s7 = ssub.s32 1, %s5
  %s8 = scalar_select 0, %s7, %s5
  $region1: #{tpu_custom_call.1} parent=0
    #allocation2 [shape = 'u8[8192]{0}', space=vmem, size = 0x2000, scoped, tag = 'input window, operand 0']
    #allocation3 [shape = 's32[2]{0}', space=sflag, size = 0x8, scoped, tag = 'scoped memory for tpu_custom_call.1']
    #allocation4 [shape = 's32[2]{0}', space=sflag, size = 0x8, scoped, tag = 'scoped memory for tpu_custom_call.1']
    #allocation5 [shape = 'u8[8192]{0}', space=vmem, size = 0x2000, scoped, tag = 'input window, operand 1']
    #allocation6 [shape = 's32[2]{0}', space=sflag, size = 0x8, scoped, tag = 'scoped memory for tpu_custom_call.1']
    #allocation7 [shape = 'u8[8192]{0}', space=vmem, size = 0x2000, scoped, tag = 'input window, operand 3, single buffered']
    #allocation8 [shape = 'u8[8192]{0}', space=vmem, size = 0x2000, scoped, tag = 'output window, operand 0, single buffered']
    %9 = vsyncpa [#allocation3], 0
    %s10 = scalar_lea.sflag [#allocation3], 1
    %11 = vsyncpa %s10, 0
    %12 = vsyncpa [#allocation6], 0
    %s13 = scalar_lea.sflag [#allocation6], 1
    %14 = vsyncpa %s13, 0
    %15 = vsyncpa [#allocation4], 0
    loop: start=0, step=1, limit=6
    $region2: #{tpu_custom_call.1} parent=1 // loop_pre_header
      _
    $region3: #{tpu_custom_call.1} parent=1 // loop_header
      %s17 = sphi 0, %s21
      %p18 = scmp.ge.s32.totalorder %s17, 6
      %s24 = sphi 0, %s36
      %s25 = sphi 0, %s32
      %s26 = sphi 0, %s24
      %s27 = sphi 0, %s25
      %s28 = sphi 0, %s26
      %s29 = sphi 0, %s27
      %s39 = sphi 0, %s41
      %s42 = sphi 0, %s39
      %s43 = sphi 0, %s42
      %s59 = sphi 0, %s43
      %s67 = sphi 0, %s69
      %s70 = sphi 0, %s67
      %s71 = sphi 0, %s70
      %s87 = sphi 0, %s71
      %s93 = sphi 0, %s95
      %s96 = sphi 0, %s93
      %s97 = sphi 0, %s96
      %s113 = sphi 0, %s97
      %s119 = sphi 0, %s121
      %s122 = sphi 0, %s119
      %s123 = sphi 0, %s122
      %s139 = sphi 0, %s123
      %s145 = sphi 0, %s147
      %s148 = sphi 0, %s145
      %s149 = sphi 0, %s148
      %s165 = sphi 0, %s149
    $region4: #{tpu_custom_call.1} parent=1 // loop_header_branch
      %20 = sbr.rel (%p18) target = $region8
    $region5: #{tpu_custom_call.1} parent=1 // loop_body
      %s22 = ssub.s32 %s17, 1
      %s23 = ssub.s32 %s17, 2
      %s30 = sadd.s32 1, %s25
      %p31 = scmp.ge.s32.totalorder %s30, 4
      %s32 = scalar_select %p31, 0, %s30
      %s33 = sadd.s32 1, %s24
      %s34 = scalar_select %p31, %s33, %s24
      %p35 = scmp.ge.s32.totalorder %s34, 1
      %s36 = scalar_select %p35, 0, %s34
      %s37 = ssub.s32 %s25, %s32
      %p38 = scmp.eq.s32.totalorder %s37, 0
      %s40 = sadd.s32 %s39, 1
      %s41 = scalar_select %p38, %s39, %s40
      %p44 = pneg %p38
      %p45 = scmp.eq.s32.totalorder %s17, 3
      %p46 = por %p44, %p45
      %p47 = scmp.ne.s32.totalorder %s39, %s42
      %p48 = scmp.eq.s32.totalorder %s17, 0
      %p49 = por %p47, %p48
      %p50 = scmp.ne.s32.totalorder %s39, %s42
      %p51 = scmp.eq.s32.totalorder %s22, 3
      %p52 = por %p50, %p51
      %p53 = scmp.ne.s32.totalorder %s42, %s43
      %p54 = scmp.eq.s32.totalorder %s22, 0
      %p55 = por %p53, %p54
      %p56 = scmp.ne.s32.totalorder %s42, %s43
      %p57 = scmp.eq.s32.totalorder %s23, 3
      %p58 = por %p56, %p57
      %p60 = scmp.ne.s32.totalorder %s43, %s59
      %p61 = scmp.eq.s32.totalorder %s23, 0
      %p62 = por %p60, %p61
      %s63 = ssub.s32 %s25, %s32
      %s64 = ssub.s32 %s24, %s36
      %s65 = sor.u32 %s63, %s64
      %p66 = scmp.eq.s32.totalorder %s65, 0
      %s68 = sadd.s32 %s67, 1
      %s69 = scalar_select %p66, %s67, %s68
      %p72 = pneg %p66
      %p73 = scmp.eq.s32.totalorder %s17, 3
      %p74 = por %p72, %p73
      %p75 = scmp.ne.s32.totalorder %s67, %s70
      %p76 = scmp.eq.s32.totalorder %s17, 0
      %p77 = por %p75, %p76
      %p78 = scmp.ne.s32.totalorder %s67, %s70
      %p79 = scmp.eq.s32.totalorder %s22, 3
      %p80 = por %p78, %p79
      %p81 = scmp.ne.s32.totalorder %s70, %s71
      %p82 = scmp.eq.s32.totalorder %s22, 0
      %p83 = por %p81, %p82
      %p84 = scmp.ne.s32.totalorder %s70, %s71
      %p85 = scmp.eq.s32.totalorder %s23, 3
      %p86 = por %p84, %p85
      %p88 = scmp.ne.s32.totalorder %s71, %s87
      %p89 = scmp.eq.s32.totalorder %s23, 0
      %p90 = por %p88, %p89
      %s91 = ssub.s32 %s24, %s36
      %p92 = scmp.eq.s32.totalorder %s91, 0
      %s94 = sadd.s32 %s93, 1
      %s95 = scalar_select %p92, %s93, %s94
      %p98 = pneg %p92
      %p99 = scmp.eq.s32.totalorder %s17, 3
      %p100 = por %p98, %p99
      %p101 = scmp.ne.s32.totalorder %s93, %s96
      %p102 = scmp.eq.s32.totalorder %s17, 0
      %p103 = por %p101, %p102
      %p104 = scmp.ne.s32.totalorder %s93, %s96
      %p105 = scmp.eq.s32.totalorder %s22, 3
      %p106 = por %p104, %p105
      %p107 = scmp.ne.s32.totalorder %s96, %s97
      %p108 = scmp.eq.s32.totalorder %s22, 0
      %p109 = por %p107, %p108
      %p110 = scmp.ne.s32.totalorder %s96, %s97
      %p111 = scmp.eq.s32.totalorder %s23, 3
      %p112 = por %p110, %p111
      %p114 = scmp.ne.s32.totalorder %s97, %s113
      %p115 = scmp.eq.s32.totalorder %s23, 0
      %p116 = por %p114, %p115
      %s117 = ssub.s32 %s24, %s36
      %p118 = scmp.eq.s32.totalorder %s117, 0
      %s120 = sadd.s32 %s119, 1
      %s121 = scalar_select %p118, %s119, %s120
      %p124 = pneg %p118
      %p125 = scmp.eq.s32.totalorder %s17, 3
      %p126 = por %p124, %p125
      %p127 = scmp.ne.s32.totalorder %s119, %s122
      %p128 = scmp.eq.s32.totalorder %s17, 0
      %p129 = por %p127, %p128
      %p130 = scmp.ne.s32.totalorder %s119, %s122
      %p131 = scmp.eq.s32.totalorder %s22, 3
      %p132 = por %p130, %p131
      %p133 = scmp.ne.s32.totalorder %s122, %s123
      %p134 = scmp.eq.s32.totalorder %s22, 0
      %p135 = por %p133, %p134
      %p136 = scmp.ne.s32.totalorder %s122, %s123
      %p137 = scmp.eq.s32.totalorder %s23, 3
      %p138 = por %p136, %p137
      %p140 = scmp.ne.s32.totalorder %s123, %s139
      %p141 = scmp.eq.s32.totalorder %s23, 0
      %p142 = por %p140, %p141
      %s143 = ssub.s32 %s24, %s36
      %p144 = scmp.eq.s32.totalorder %s143, 0
      %s146 = sadd.s32 %s145, 1
      %s147 = scalar_select %p144, %s145, %s146
      %p150 = pneg %p144
      %p151 = scmp.eq.s32.totalorder %s17, 3
      %p152 = por %p150, %p151
      %p153 = scmp.ne.s32.totalorder %s145, %s148
      %p154 = scmp.eq.s32.totalorder %s17, 0
      %p155 = por %p153, %p154
      %p156 = scmp.ne.s32.totalorder %s145, %s148
      %p157 = scmp.eq.s32.totalorder %s22, 3
      %p158 = por %p156, %p157
      %p159 = scmp.ne.s32.totalorder %s148, %s149
      %p160 = scmp.eq.s32.totalorder %s22, 0
      %p161 = por %p159, %p160
      %p162 = scmp.ne.s32.totalorder %s148, %s149
      %p163 = scmp.eq.s32.totalorder %s23, 3
      %p164 = por %p162, %p163
      %p166 = scmp.ne.s32.totalorder %s149, %s165
      %p167 = scmp.eq.s32.totalorder %s23, 0
      %p168 = por %p166, %p167
      %p169 = scmp.le.s32.totalorder 1, %s17
      %p170 = scmp.lt.s32.totalorder %s17, 5
      %p171 = pnand %p169, %p170
      %p172 = pneg %p171
      // Predicated region
      $region9: #{tpu_custom_call.1} parent=5 // pred_check
        _
      $region10: #{tpu_custom_call.1} parent=5 // pred_check_branch
        %174 = sbr.rel (%p171) target = $region12
      $region11: #{tpu_custom_call.1} parent=5 // pred_region
        %s175 = ssub.s32 %s17, 1
        // Predicated region
        $region13: #{tpu_custom_call.1} parent=11 // pred_check
          %p176 = pneg %p109
        $region14: #{tpu_custom_call.1} parent=11 // pred_check_branch
          %178 = sbr.rel (%p176) target = $region16
        $region15: #{tpu_custom_call.1} parent=11 // pred_region
          %p179 = scmp.lt.s32.totalorder %s26, 0
          %s180 = scalar_select %p179, %s26, 0
          %s181 = scalar_lea.vmem %s2, %s180
        $region16: #{tpu_custom_call.1} parent=11 // pred_fallthru
          _
        // Predicated region
        $region17: #{tpu_custom_call.1} parent=11 // pred_check
          %p182 = pneg %p135
        $region18: #{tpu_custom_call.1} parent=11 // pred_check_branch
          %184 = sbr.rel (%p182) target = $region20
        $region19: #{tpu_custom_call.1} parent=11 // pred_region
          %s186 = ssub.s32 256, 256
          %187 = vsyncadd [#allocation6], %s186
          %s188 = smul.addr %s26, 128
          %s189 = scalar_lea.hbm %s3, %s188
          %s190 = sshll.u32 [#allocation7], 4
          %s191 = int_to_ptr.vmem [resolvable:$true] %s190
          %196 = dma.hbm_to_vmem [thread:$0]  %s189, 256, %s191, [#allocation6], 128, 128, 8
        $region20: #{tpu_custom_call.1} parent=11 // pred_fallthru
          _
      $region12: #{tpu_custom_call.1} parent=5 // pred_fallthru
        _
      %p197 = scmp.lt.s32.totalorder %s17, 4
      // Predicated region
      $region21: #{tpu_custom_call.1} parent=5 // pred_check
        %p198 = pneg %p197
      $region22: #{tpu_custom_call.1} parent=5 // pred_check_branch
        %200 = sbr.rel (%p198) target = $region24
      $region23: #{tpu_custom_call.1} parent=5 // pred_region
        // Predicated region
        $region25: #{tpu_custom_call.1} parent=23 // pred_check
          %p201 = pneg %p49
        $region26: #{tpu_custom_call.1} parent=23 // pred_check_branch
          %203 = sbr.rel (%p201) target = $region28
        $region27: #{tpu_custom_call.1} parent=23 // pred_region
          %s204 = sand.u32 %s39, 1
          %s205 = scalar_lea.sflag [#allocation3], %s204
          %s206 = sand.u32 %s39, 1
          %s207 = smul.addr %s206, 8
          %s208 = scalar_lea.vmem [#allocation2], %s207
          %s210 = ssub.s32 128, 128
          %211 = vsyncadd %s205, %s210
          %s212 = smul.addr %s25, 2
          %s213 = smul.addr %s212, 64
          %s214 = scalar_lea.hbm %s0, %s213
          %s215 = sshll.u32 %s208, 4
          %s216 = int_to_ptr.vmem [resolvable:$true] %s215
          %221 = dma.hbm_to_vmem [thread:$0]  %s214, 128, %s216, %s205, 64, 64, 4
        $region28: #{tpu_custom_call.1} parent=23 // pred_fallthru
          _
        // Predicated region
        $region29: #{tpu_custom_call.1} parent=23 // pred_check
          %p222 = pneg %p77
        $region30: #{tpu_custom_call.1} parent=23 // pred_check_branch
          %224 = sbr.rel (%p222) target = $region32
        $region31: #{tpu_custom_call.1} parent=23 // pred_region
          %s225 = sand.u32 %s17, 1
          %s226 = scalar_lea.sflag [#allocation6], %s225
          %s227 = sand.u32 %s67, 1
          %s228 = smul.addr %s227, 8
          %s229 = scalar_lea.vmem [#allocation5], %s228
          %s231 = ssub.s32 128, 128
          %232 = vsyncadd %s226, %s231
          %s233 = sadd.s32 %s24, %s25
          %s234 = smul.addr %s233, 128
          %s235 = scalar_lea.hbm %s1, %s234
          %s237 = sshll.u32 %s229, 4
          %s238 = int_to_ptr.vmem [resolvable:$true] %s237
          %240 = dma.hbm_to_vmem [thread:$0]  %s235, 128, %s238, %s226
        $region32: #{tpu_custom_call.1} parent=23 // pred_fallthru
          _
      $region24: #{tpu_custom_call.1} parent=5 // pred_fallthru
        _
      %p241 = scmp.le.s32.totalorder 1, %s17
      %p242 = scmp.lt.s32.totalorder %s17, 5
      %p243 = pnand %p241, %p242
      %p244 = pneg %p243
      // Predicated region
      $region33: #{tpu_custom_call.1} parent=5 // pred_check
        _
      $region34: #{tpu_custom_call.1} parent=5 // pred_check_branch
        %246 = sbr.rel (%p243) target = $region36
      $region35: #{tpu_custom_call.1} parent=5 // pred_region
        %s247 = ssub.s32 %s17, 1
        %s248 = sand.u32 %s42, 1
        %s249 = scalar_lea.sflag [#allocation3], %s248
        %s250 = sand.u32 %s42, 1
        %s251 = smul.addr %s250, 8
        %s252 = scalar_lea.vmem [#allocation2], %s251
        // Predicated region
        $region37: #{tpu_custom_call.1} parent=35 // pred_check
          %p253 = pneg %p55
        $region38: #{tpu_custom_call.1} parent=35 // pred_check_branch
          %255 = sbr.rel (%p253) target = $region40
        $region39: #{tpu_custom_call.1} parent=35 // pred_region
          %256 = dma.done %s249, 128
        $region40: #{tpu_custom_call.1} parent=35 // pred_fallthru
          _
        %s257 = sand.u32 %s22, 1
        %s258 = scalar_lea.sflag [#allocation6], %s257
        %s259 = sand.u32 %s70, 1
        %s260 = smul.addr %s259, 8
        %s261 = scalar_lea.vmem [#allocation5], %s260
        // Predicated region
        $region41: #{tpu_custom_call.1} parent=35 // pred_check
          %p262 = pneg %p83
        $region42: #{tpu_custom_call.1} parent=35 // pred_check_branch
          %264 = sbr.rel (%p262) target = $region44
        $region43: #{tpu_custom_call.1} parent=35 // pred_region
          %265 = dma.done %s258, 128
        $region44: #{tpu_custom_call.1} parent=35 // pred_fallthru
          _
        // Predicated region
        $region45: #{tpu_custom_call.1} parent=35 // pred_check
          %p266 = pneg %p135
        $region46: #{tpu_custom_call.1} parent=35 // pred_check_branch
          %268 = sbr.rel (%p266) target = $region48
        $region47: #{tpu_custom_call.1} parent=35 // pred_region
          %269 = dma.done [#allocation6], 256
        $region48: #{tpu_custom_call.1} parent=35 // pred_fallthru
          _
        %s270 = sand.u32 %s42, 1
        %s271 = scalar_lea.sflag [#allocation3], %s270
        %s272 = sand.u32 %s42, 1
        %s273 = smul.addr %s272, 8
        %s274 = scalar_lea.vmem [#allocation2], %s273
        %p275 = pneg %p55
        %p276 = pneg %p52
        %s277 = sand.u32 %s22, 1
        %s278 = scalar_lea.sflag [#allocation6], %s277
        %s279 = sand.u32 %s70, 1
        %s280 = smul.addr %s279, 8
        %s281 = scalar_lea.vmem [#allocation5], %s280
        %p282 = pneg %p83
        %p283 = pneg %p80
        %p284 = scmp.lt.s32.totalorder %s26, 0
        %s285 = scalar_select %p284, %s26, 0
        %s286 = scalar_lea.vmem %s2, %s285
        %p287 = pneg %p109
        %p288 = pneg %p106
        %p289 = pneg %p135
        %p290 = pneg %p132
        %p291 = pneg %p161
        %p292 = pneg %p158
        %p293 = scmp.lt.s32.totalorder %s26, 0
        %s294 = scalar_select %p293, %s26, 0
        %s295 = scalar_lea.vmem %s2, %s294
        %p297 = scmp.eq.s32.totalorder %s27, 0
        // Predicated region
        $region49: #{tpu_custom_call.1} parent=35 // pred_check
          %p298 = pneg %p297
        $region50: #{tpu_custom_call.1} parent=35 // pred_check_branch
          %300 = sbr.rel (%p298) target = $region52
        $region51: #{tpu_custom_call.1} parent=35 // pred_region
          %301 = vst [vmem:[#allocation8] sm:$0xff] 0.0
          %302 = vst [vmem:[#allocation8 + $0x8] sm:$0xff] 0.0
        $region52: #{tpu_custom_call.1} parent=35 // pred_fallthru
          _
        %v303 = vld [vmem:[#allocation8] sm:$0xff]
        %v304 = vld [vmem:[#allocation8 + $0x8] sm:$0xff]
        %v305 = vld [vmem:[%s252] sm:$0xf]
        %v306 = vld [vmem:[%s252 + $0x4] sm:$0xf]
        %v307 = vld [vmem:[%s261] sm:$0xff]
        %v308 = vunpack.c.l.s8.bf16 %v307
        %v309 = vunpack.c.h.s8.bf16 %v307
        %v312 = vunpack.c.l.b16 %v305
        %v313 = vunpack.c.l.b16 %v306
        %v314 = vpack.c.b16 %v313, %v312
        %vm315 = vcmask 261120
        %v317 = vsel %vm315, %v314, 0
        %319 = vmatprep.subr.bf16.mxu0 0
        %320 = vmatpush1.bf16.msra.mxu0 0
        %321 = vmatprep.subr.bf16.mxu0 0
        %322 = vmatpush1.bf16.msra.mxu0 0
        %323 = vmatprep.subr.bf16.mxu0 0
        %324 = vmatpush1.bf16.msra.mxu0 0
        %325 = vmatprep.subr.bf16.mxu0 0
        %326 = vmatpush1.bf16.msra.mxu0 0
        %327 = vmatprep.subr.bf16.mxu0 0
        %328 = vmatpush1.bf16.msra.mxu0 0
        %329 = vmatprep.subr.bf16.mxu0 0
        %330 = vmatpush1.bf16.msra.mxu0 0
        %331 = vmatprep.subr.bf16.mxu0 0
        %332 = vmatpush1.bf16.msra.mxu0 %v309
        %333 = vmatprep.subr.bf16.mxu0 0
        %334 = vmatpush1.bf16.msra.mxu0 %v308
        %335 = vmatprep.subr.bf16.mxu0 0
        %336 = vmatpush2.bf16.msra.mxu0 0
        %337 = vmatprep.subr.bf16.mxu0 0
        %338 = vmatpush2.bf16.msra.mxu0 0
        %339 = vmatprep.subr.bf16.mxu0 0
        %340 = vmatpush2.bf16.msra.mxu0 0
        %341 = vmatprep.subr.bf16.mxu0 0
        %342 = vmatpush2.bf16.msra.mxu0 0
        %343 = vmatprep.subr.bf16.mxu0 0
        %344 = vmatpush2.bf16.msra.mxu0 0
        %345 = vmatprep.subr.bf16.mxu0 0
        %346 = vmatpush2.bf16.msra.mxu0 0
        %347 = vmatprep.subr.bf16.mxu0 0
        %348 = vmatpush2.bf16.msra.mxu0 0
        %349 = vmatprep.subr.bf16.mxu0 0
        %350 = vmatpush2.bf16.msra.mxu0 0
        %351 = vmatprep.mubr.bf16.mxu0 0
        %352 = vmatmul.mubr.bf16.gmra.mxu0 %v317
        %v353 = vpop.f32.mrf.mxu0
        %v354 = vadd.f32 0.0, %v353
        %v355 = vpop.f32.mrf.mxu0
        %v356 = vpop.f32.mrf.mxu0
        %v357 = vadd.f32 0.0, %v356
        %v358 = vpop.f32.mrf.mxu0
        %359 = vdwg.mxu0
        %v360 = vadd.f32 %v303, %v354
        %v361 = vadd.f32 %v304, %v357
        %362 = vst [vmem:[#allocation8] sm:$0xff] %v360
        %363 = vst [vmem:[#allocation8 + $0x8] sm:$0xff] %v361
        %p364 = scmp.eq.s32.totalorder %s27, 3
        // Predicated region
        $region53: #{tpu_custom_call.1} parent=35 // pred_check
          %p365 = pneg %p364
        $region54: #{tpu_custom_call.1} parent=35 // pred_check_branch
          %367 = sbr.rel (%p365) target = $region56
        $region55: #{tpu_custom_call.1} parent=35 // pred_region
          %v368 = vld [vmem:[#allocation8] sm:$0xff]
          %v369 = vld [vmem:[#allocation8 + $0x8] sm:$0xff]
          %v370 = vld [vmem:[%s295] sm:$0x1]
          %v372 = vlaneseq
          %v373 = vshrl.u32 %v372, 7
          %v374 = vsub.s32 0, %v373
          %v375 = vrot.slane %v370, %v374
          %v377 = vmul.f32 %v368, %v375
          %v378 = vmul.f32 %v369, %v375
          %v379 = vld [vmem:[#allocation7] sm:$0xff]
          %v380 = vld [vmem:[#allocation7 + $0x8] sm:$0xff]
          %v381 = vadd.f32 %v377, %v379
          %v382 = vadd.f32 %v378, %v380
          %v383 = vmax.f32 %v381, 0.0
          %v384 = vmax.f32 %v382, 0.0
          %385 = vst [vmem:[#allocation8] sm:$0xff] %v383
          %386 = vst [vmem:[#allocation8 + $0x8] sm:$0xff] %v384
        $region56: #{tpu_custom_call.1} parent=35 // pred_fallthru
          _
        // Predicated region
        $region57: #{tpu_custom_call.1} parent=35 // pred_check
          %p387 = pneg %p158
        $region58: #{tpu_custom_call.1} parent=35 // pred_check_branch
          %389 = sbr.rel (%p387) target = $region60
        $region59: #{tpu_custom_call.1} parent=35 // pred_region
          %s391 = ssub.s32 256, 256
          %392 = vsyncadd [#allocation4], %s391
          %s393 = smul.addr %s26, 128
          %s394 = scalar_lea.hbm %s4, %s393
          %s395 = sshll.u32 [#allocation8], 4
          %s396 = int_to_ptr.vmem [resolvable:$true] %s395
          %401 = dma.vmem_to_hbm [thread:$0]  %s396, 256, %s394, [#allocation4], 128, 128, 8
        $region60: #{tpu_custom_call.1} parent=35 // pred_fallthru
          _
        // Predicated region
        $region61: #{tpu_custom_call.1} parent=35 // pred_check
          %p402 = pneg %p158
        $region62: #{tpu_custom_call.1} parent=35 // pred_check_branch
          %404 = sbr.rel (%p402) target = $region64
        $region63: #{tpu_custom_call.1} parent=35 // pred_region
          %405 = dma.done [#allocation4], 256
        $region64: #{tpu_custom_call.1} parent=35 // pred_fallthru
          _
      $region36: #{tpu_custom_call.1} parent=5 // pred_fallthru
        _
      %p406 = scmp.le.s32.totalorder 2, %s17
      // Predicated region
      $region65: #{tpu_custom_call.1} parent=5 // pred_check
        %p407 = pneg %p406
      $region66: #{tpu_custom_call.1} parent=5 // pred_check_branch
        %409 = sbr.rel (%p407) target = $region68
      $region67: #{tpu_custom_call.1} parent=5 // pred_region
        %s410 = ssub.s32 %s17, 2
      $region68: #{tpu_custom_call.1} parent=5 // pred_fallthru
        _
    $region6: #{tpu_custom_call.1} parent=1 // loop_footer
      %s21 = sadd.s32 1, %s17
    $region7: #{tpu_custom_call.1} parent=1 // loop_footer_branch
      %16 = sbr.rel target = $region3
    $region8: #{tpu_custom_call.1} parent=1 // loop_exit
      _
    %411 = vsyncpa [#allocation3], 1
    %s412 = scalar_lea.sflag [#allocation3], 1
    %413 = vsyncpa %s412, 1
    %414 = vsyncpa [#allocation6], 1
    %s415 = scalar_lea.sflag [#allocation6], 1
    %416 = vsyncpa %s415, 1
    %417 = vsyncpa [#allocation4], 1
    %s418 = scalar_lea.sflag [#allocation4], 1
    %419 = vsyncpa %s418, 1

</llo_original>
